<compile_context>
chip_gen: v6e
topology: v6e:2x2x1
jax: 0.10.0
libtpu: 0.0.40
codegen_flags: <defaults>
</compile_context>

<pallas_src>
import functools

import numpy as np
import jax
import jax.numpy as jnp
from jax.experimental import pallas as pl
from jax.experimental.pallas import tpu as pltpu


def _round_up(v, m):
    return ((v + m - 1) // m) * m


# --------------------------------------------------------------------------
# Kernel
# --------------------------------------------------------------------------
def agent_kernel(*refs, n_parts, hidden_pad, action_dim, pos_dim, head_dir_dim):
    G = hidden_pad
    A, P, D = action_dim, pos_dim, head_dir_dim

    inv_t_ref = refs[0]
    x_refs = refs[1:1 + n_parts]
    w_refs = refs[1 + n_parts:1 + 2 * n_parts]
    (b_gates_ref, b_hn_ref, w_heads_ref,
     b_heads_ref) = refs[1 + 2 * n_parts:1 + 2 * n_parts + 4]
    out_ref = refs[-1]

    # ---- single-step GRU (h0 = 0): partial matmuls over the split input ----
    acc = jnp.dot(x_refs[0][...], w_refs[0][...],
                  preferred_element_type=jnp.float32)
    for xr, wr in zip(x_refs[1:], w_refs[1:]):
        acc = acc + jnp.dot(xr[...], wr[...],
                            preferred_element_type=jnp.float32)
    gates = acc + b_gates_ref[...]                      # (BT, 3G), gate-aligned

    r = jax.nn.sigmoid(gates[:, 0:G])
    z = jax.nn.sigmoid(gates[:, G:2 * G])
    n = jnp.tanh(gates[:, 2 * G:3 * G] + r * b_hn_ref[...])
    h = (1.0 - z) * n                                   # (BT, G); cols >= H are 0

    # ---- fused linear heads: [actor | critic | pos | head_dir | info | pad]
    heads = jnp.dot(h.astype(w_heads_ref.dtype), w_heads_ref[...],
                    preferred_element_type=jnp.float32) + b_heads_ref[...]

    # ---- calibrated max-softmax confidences --------------------------------
    inv_t = inv_t_ref[0, 0]                             # 1 / exp(log_temperature)

    def max_softmax(logits):
        cal = logits * inv_t
        m = jnp.max(cal, axis=-1, keepdims=True)
        s = jnp.sum(jnp.exp(cal - m), axis=-1, keepdims=True)
        return pl.reciprocal(s, approx=True)            # max of softmax row

    p0 = A + 1
    p1 = p0 + P
    d1 = p1 + D
    conf_col = d1 + 1                                   # column after info_value
    conf = (max_softmax(heads[:, 0:A])
            + max_softmax(heads[:, p0:p1])
            + max_softmax(heads[:, p1:d1])) * (1.0 / 3.0)   # (BT, 1)

    # single fused store: confidence goes into the spare padded column
    lane = jax.lax.broadcasted_iota(jnp.int32, heads.shape, dimension=1)
    out_ref[...] = jnp.where(lane == conf_col, conf, heads)


# --------------------------------------------------------------------------
# Parameters (synthetic, deterministic; matches nn.Module shapes)
# --------------------------------------------------------------------------
def make_params(key, pos_pred_dim, hidden_dim=32, action_dim=3,
                head_dir_dim=2, belief_dim=0):
    H = hidden_dim
    A, P, D = action_dim, pos_pred_dim, head_dir_dim
    part_dims = [P, D, A] + ([belief_dim] if belief_dim > 0 else [])
    input_dim = sum(part_dims)
    G = _round_up(H, 128)
    out_cols = A + 1 + P + D + 1                        # actor|critic|pos|head|info
    OUTW = out_cols + 1                                 # + confidence column

    ks = jax.random.split(key, 13)
    s = 0.1

    # GRU (only the parts that matter for one step with h0 = 0)
    w_ih = jax.random.normal(ks[0], (3 * H, input_dim), jnp.float32) * s
    b_ih = jax.random.normal(ks[1], (3 * H,), jnp.float32) * s
    b_hh = jax.random.normal(ks[2], (3 * H,), jnp.float32) * s

    # Linear heads (PyTorch layout: (out, in))
    w_actor = jax.random.normal(ks[3], (A, H), jnp.float32) * s
    b_actor = jax.random.normal(ks[4], (A,), jnp.float32) * s
    w_critic = jax.random.normal(ks[5], (1, H), jnp.float32) * s
    b_critic = jax.random.normal(ks[6], (1,), jnp.float32) * s
    w_pos = jax.random.normal(ks[7], (P, H), jnp.float32) * s
    b_pos = jax.random.normal(ks[8], (P,), jnp.float32) * s
    w_head = jax.random.normal(ks[9], (D, H), jnp.float32) * s
    b_head = jax.random.normal(ks[10], (D,), jnp.float32) * s
    w_info = jax.random.normal(ks[11], (1, H), jnp.float32) * s
    b_info = jax.random.normal(ks[12], (1,), jnp.float32) * s
    log_temperature = jnp.zeros((), jnp.float32)

    # ---- pre-packed kernel tensors -------------------------------------
    def pad_gate_cols(m):          # (rows, 3H) -> (rows, 3G), gates 128-aligned
        blocks = [m[:, g * H:(g + 1) * H] for g in range(3)]
        return jnp.concatenate(
            [jnp.pad(b, ((0, 0), (0, G - H))) for b in blocks], axis=1)

    w_ih_t = w_ih.T                                     # (input_dim, 3H)
    w_parts, off = [], 0
    for d in part_dims:
        w_parts.append(pad_gate_cols(w_ih_t[off:off + d]).astype(jnp.bfloat16))
        off += d

    b_gates = pad_gate_cols(jnp.concatenate(
        [b_ih[0:H] + b_hh[0:H],
         b_ih[H:2 * H] + b_hh[H:2 * H],
         b_ih[2 * H:3 * H]])[None, :])                   # (1, 3G) f32
    b_hn = jnp.pad(b_hh[2 * H:3 * H], (0, G - H))[None, :]   # (1, G) f32

    w_heads = jnp.concatenate(
        [w_actor, w_critic, w_pos, w_head, w_info], axis=0).T     # (H, 15)
    w_heads = jnp.pad(
        w_heads, ((0, G - H), (0, OUTW - out_cols))).astype(jnp.bfloat16)
    b_heads = jnp.pad(
        jnp.concatenate([b_actor, b_critic, b_pos, b_head, b_info]),
        (0, OUTW - out_cols))[None, :]                   # (1, OUTW) f32

    inv_t = jnp.exp(-log_temperature).reshape(1, 1)      # (1,1) f32, SMEM scalar

    # raw f32 parameters kept around for the pure-JAX reference check
    ref = dict(hidden_dim=H, w_ih=w_ih, b_ih=b_ih, b_hh=b_hh,
               actor=(w_actor, b_actor), critic=(w_critic, b_critic),
               pos=(w_pos, b_pos), head=(w_head, b_head),
               info=(w_info, b_info), log_temperature=log_temperature)

    return dict(
        w_parts=tuple(w_parts), b_gates=b_gates, b_hn=b_hn,
        w_heads=w_heads, b_heads=b_heads, inv_t=inv_t,
        hidden_pad=G, action_dim=A, pos_pred_dim=P, head_dir_dim=D,
        out_width=OUTW, ref=ref,
    )


# --------------------------------------------------------------------------
# Wrapper (mirrors Agent.forward)
# --------------------------------------------------------------------------
def agent_forward(params, position, direction, prev_option, belief=None):
    parts = [position, direction, prev_option]
    if belief is not None:
        parts.append(belief)
    assert len(parts) == len(params["w_parts"])
    x_parts = [p.astype(jnp.bfloat16) for p in parts]    # halve input DMA bytes

    B = position.shape[0]
    G = params["hidden_pad"]
    A = params["action_dim"]
    P = params["pos_pred_dim"]
    D = params["head_dir_dim"]
    OUTW = params["out_width"]

    BT = min(1024, _round_up(B, 16))                     # bf16 sublane multiple
    grid = (pl.cdiv(B, BT),)

    kernel = functools.partial(
        agent_kernel, n_parts=len(x_parts), hidden_pad=G,
        action_dim=A, pos_dim=P, head_dir_dim=D)

    def resident(arr):                                   # weights stay in VMEM
        return pl.BlockSpec(arr.shape, lambda i: (0, 0))

    in_specs = (
        [pl.BlockSpec(memory_space=pltpu.MemorySpace.SMEM)]      # inv_t scalar
        + [pl.BlockSpec((BT, p.shape[1]), lambda i: (i, 0)) for p in x_parts]
        + [resident(w) for w in params["w_parts"]]
        + [resident(params["b_gates"]), resident(params["b_hn"]),
           resident(params["w_heads"]), resident(params["b_heads"])]
    )
    out_spec = pl.BlockSpec((BT, OUTW), lambda i: (i, 0))

    out = pl.pallas_call(
        kernel,
        grid=grid,
        in_specs=in_specs,
        out_specs=out_spec,
        out_shape=jax.ShapeDtypeStruct((B, OUTW), jnp.float32),
        compiler_params=pltpu.CompilerParams(
            dimension_semantics=("parallel",),           # v7x: shard batch on 2 TCs
        ),
    )(params["inv_t"], *x_parts, *params["w_parts"],
      params["b_gates"], params["b_hn"], params["w_heads"], params["b_heads"])

    # slice the fused (B, 16) slab into the six module outputs
    action_logits = out[:, 0:A]
    value = out[:, A:A + 1]
    pos_logits = out[:, A + 1:A + 1 + P]
    head_logits = out[:, A + 1 + P:A + 1 + P + D]
    info_value = out[:, A + 1 + P + D]                   # (B,)
    confidence = out[:, A + 2 + P + D]                   # (B,)
    return action_logits, value, pos_logits, head_logits, confidence, info_value


# --------------------------------------------------------------------------
# Pure-JAX reference (f32, unpadded) for a correctness check
# --------------------------------------------------------------------------
def agent_forward_ref(raw, position, direction, prev_option, belief=None):
    parts = [position, direction, prev_option]
    if belief is not None:
        parts.append(belief)
    x = jnp.concatenate(parts, axis=-1).astype(jnp.float32)
    H = raw["hidden_dim"]
    gi = x @ raw["w_ih"].T + raw["b_ih"]
    r = jax.nn.sigmoid(gi[:, 0:H] + raw["b_hh"][0:H])
    z = jax.nn.sigmoid(gi[:, H:2 * H] + raw["b_hh"][H:2 * H])
    n = jnp.tanh(gi[:, 2 * H:3 * H] + r * raw["b_hh"][2 * H:3 * H])
    h = (1.0 - z) * n

    def lin(wb):
        return h @ wb[0].T + wb[1]

    action_logits = lin(raw["actor"])
    value = lin(raw["critic"])
    pos_logits = lin(raw["pos"])
    head_logits = lin(raw["head"])
    info_value = lin(raw["info"])[:, 0]
    t = jnp.exp(raw["log_temperature"])
    conf = (jax.nn.softmax(action_logits / t, -1).max(-1)
            + jax.nn.softmax(pos_logits / t, -1).max(-1)
            + jax.nn.softmax(head_logits / t, -1).max(-1)) / 3.0
    return action_logits, value, pos_logits, head_logits, conf, info_value


if __name__ == "__main__":
    B = 2
    pos_pred_dim = 8          # "typically seq_len"
    head_dir_dim = 2
    action_dim = 3
    hidden_dim = 32

    key = jax.random.PRNGKey(0)
    kp, kd = jax.random.split(key)
    params = make_params(kp, pos_pred_dim, hidden_dim, action_dim, head_dir_dim)

    k1, k2, k3 = jax.random.split(kd, 3)
    position = jax.nn.one_hot(
        jax.random.randint(k1, (B,), 0, pos_pred_dim), pos_pred_dim,
        dtype=jnp.float32)
    direction = jax.nn.one_hot(
        jax.random.randint(k2, (B,), 0, head_dir_dim), head_dir_dim,
        dtype=jnp.float32)
    prev_option = jax.nn.one_hot(
        jax.random.randint(k3, (B,), 0, action_dim), action_dim,
        dtype=jnp.float32)

    outs = agent_forward(params, position, direction, prev_option)
    outs = jax.block_until_ready(outs)

    # loose tolerance: weights are bf16 in the kernel, reference is pure f32
    refs = agent_forward_ref(params["ref"], position, direction, prev_option)
    for got, want in zip(outs, refs):
        np.testing.assert_allclose(np.asarray(got), np.asarray(want),
                                   rtol=2e-2, atol=2e-2)

    # TODO(synk): VTE() (top-k re-simulation loop) is host-side control flow
    # around forward(); it is not part of the hot path and is left out.
    print("KERNEL_OK")
</pallas_src>

<mosaic_0001>
module attributes {stable_mosaic.version = 11 : i64} {
  func.func @agent_kernel(%arg0: i32, %arg1: memref<1x1xf32, #tpu.memory_space<smem>>, %arg2: memref<16x8xbf16, #tpu.memory_space<vmem>>, %arg3: memref<16x2xbf16, #tpu.memory_space<vmem>>, %arg4: memref<16x3xbf16, #tpu.memory_space<vmem>>, %arg5: memref<8x384xbf16, #tpu.memory_space<vmem>>, %arg6: memref<2x384xbf16, #tpu.memory_space<vmem>>, %arg7: memref<3x384xbf16, #tpu.memory_space<vmem>>, %arg8: memref<1x384xf32, #tpu.memory_space<vmem>>, %arg9: memref<1x128xf32, #tpu.memory_space<vmem>>, %arg10: memref<128x16xbf16, #tpu.memory_space<vmem>>, %arg11: memref<1x16xf32, #tpu.memory_space<vmem>>, %arg12: memref<16x16xf32, #tpu.memory_space<vmem>>) attributes {dimension_semantics = [#tpu.dimension_semantics<parallel>], iteration_bounds = array<i64: 1>, scalar_prefetch = 0 : i64, scratch_operands = 0 : i64, tpu.core_type = #tpu.core_type<tc>, window_params = [{transform_indices = @transform_0, window_bounds = array<i64: 1, 1>}, {transform_indices = @transform_1, window_bounds = array<i64: 16, 8>}, {transform_indices = @transform_2, window_bounds = array<i64: 16, 2>}, {transform_indices = @transform_3, window_bounds = array<i64: 16, 3>}, {pipeline_mode = #tpu.pipeline_mode<synchronous>, transform_indices = @transform_4, window_bounds = array<i64: 8, 384>}, {pipeline_mode = #tpu.pipeline_mode<synchronous>, transform_indices = @transform_5, window_bounds = array<i64: 2, 384>}, {pipeline_mode = #tpu.pipeline_mode<synchronous>, transform_indices = @transform_6, window_bounds = array<i64: 3, 384>}, {pipeline_mode = #tpu.pipeline_mode<synchronous>, transform_indices = @transform_7, window_bounds = array<i64: 1, 384>}, {pipeline_mode = #tpu.pipeline_mode<synchronous>, transform_indices = @transform_8, window_bounds = array<i64: 1, 128>}, {pipeline_mode = #tpu.pipeline_mode<synchronous>, transform_indices = @transform_9, window_bounds = array<i64: 128, 16>}, {pipeline_mode = #tpu.pipeline_mode<synchronous>, transform_indices = @transform_10, window_bounds = array<i64: 1, 16>}, {transform_indices = @transform_11, window_bounds = array<i64: 16, 16>}]} {
    %c0 = arith.constant 0 : index
    %c0_0 = arith.constant 0 : index
    %0 = vector.load %arg2[%c0, %c0_0] : memref<16x8xbf16, #tpu.memory_space<vmem>>, vector<16x8xbf16>
    %c0_1 = arith.constant 0 : index
    %c0_2 = arith.constant 0 : index
    %1 = vector.load %arg5[%c0_1, %c0_2] : memref<8x384xbf16, #tpu.memory_space<vmem>>, vector<8x384xbf16>
    %cst = arith.constant dense<0.000000e+00> : vector<16x384xf32>
    %2 = tpu.matmul %0, %1, %cst {dimension_numbers = #tpu.dot_dimension_numbers<[1], [0], [0], [1], [0, 0, 1, 1], [], []>} : vector<16x8xbf16>, vector<8x384xbf16>, vector<16x384xf32> -> vector<16x384xf32>
    %c0_3 = arith.constant 0 : index
    %c0_4 = arith.constant 0 : index
    %3 = vector.load %arg3[%c0_3, %c0_4] : memref<16x2xbf16, #tpu.memory_space<vmem>>, vector<16x2xbf16>
    %c0_5 = arith.constant 0 : index
    %c0_6 = arith.constant 0 : index
    %4 = vector.load %arg6[%c0_5, %c0_6] : memref<2x384xbf16, #tpu.memory_space<vmem>>, vector<2x384xbf16>
    %cst_7 = arith.constant dense<0.000000e+00> : vector<16x384xf32>
    %5 = tpu.matmul %3, %4, %cst_7 {dimension_numbers = #tpu.dot_dimension_numbers<[1], [0], [0], [1], [0, 0, 1, 1], [], []>} : vector<16x2xbf16>, vector<2x384xbf16>, vector<16x384xf32> -> vector<16x384xf32>
    %6 = arith.addf %2, %5 : vector<16x384xf32>
    %c0_8 = arith.constant 0 : index
    %c0_9 = arith.constant 0 : index
    %7 = vector.load %arg4[%c0_8, %c0_9] : memref<16x3xbf16, #tpu.memory_space<vmem>>, vector<16x3xbf16>
    %c0_10 = arith.constant 0 : index
    %c0_11 = arith.constant 0 : index
    %8 = vector.load %arg7[%c0_10, %c0_11] : memref<3x384xbf16, #tpu.memory_space<vmem>>, vector<3x384xbf16>
    %cst_12 = arith.constant dense<0.000000e+00> : vector<16x384xf32>
    %9 = tpu.matmul %7, %8, %cst_12 {dimension_numbers = #tpu.dot_dimension_numbers<[1], [0], [0], [1], [0, 0, 1, 1], [], []>} : vector<16x3xbf16>, vector<3x384xbf16>, vector<16x384xf32> -> vector<16x384xf32>
    %10 = arith.addf %6, %9 : vector<16x384xf32>
    %c0_13 = arith.constant 0 : index
    %c0_14 = arith.constant 0 : index
    %11 = vector.load %arg8[%c0_13, %c0_14] : memref<1x384xf32, #tpu.memory_space<vmem>>, vector<1x384xf32>
    %12 = vector.broadcast %11 : vector<1x384xf32> to vector<16x384xf32>
    %13 = arith.addf %10, %12 : vector<16x384xf32>
    %14 = vector.extract_strided_slice %13 {offsets = [0, 0], sizes = [16, 128], strides = [1, 1]} : vector<16x384xf32> to vector<16x128xf32>
    %15 = arith.negf %14 : vector<16x128xf32>
    %16 = math.exp %15 : vector<16x128xf32>
    %cst_15 = arith.constant 1.000000e+00 : f32
    %17 = vector.broadcast %cst_15 : f32 to vector<16x128xf32>
    %18 = arith.addf %17, %16 : vector<16x128xf32>
    %19 = arith.divf %17, %18 : vector<16x128xf32>
    %20 = vector.extract_strided_slice %13 {offsets = [0, 128], sizes = [16, 128], strides = [1, 1]} : vector<16x384xf32> to vector<16x128xf32>
    %21 = arith.negf %20 : vector<16x128xf32>
    %22 = math.exp %21 : vector<16x128xf32>
    %cst_16 = arith.constant 1.000000e+00 : f32
    %23 = vector.broadcast %cst_16 : f32 to vector<16x128xf32>
    %24 = arith.addf %23, %22 : vector<16x128xf32>
    %25 = arith.divf %23, %24 : vector<16x128xf32>
    %26 = vector.extract_strided_slice %13 {offsets = [0, 256], sizes = [16, 128], strides = [1, 1]} : vector<16x384xf32> to vector<16x128xf32>
    %c0_17 = arith.constant 0 : index
    %c0_18 = arith.constant 0 : index
    %27 = vector.load %arg9[%c0_17, %c0_18] : memref<1x128xf32, #tpu.memory_space<vmem>>, vector<1x128xf32>
    %28 = vector.broadcast %27 : vector<1x128xf32> to vector<16x128xf32>
    %29 = arith.mulf %19, %28 : vector<16x128xf32>
    %30 = arith.addf %26, %29 : vector<16x128xf32>
    %31 = math.tanh %30 : vector<16x128xf32>
    %cst_19 = arith.constant 1.000000e+00 : f32
    %32 = vector.broadcast %cst_19 : f32 to vector<16x128xf32>
    %33 = arith.subf %32, %25 : vector<16x128xf32>
    %34 = arith.mulf %33, %31 : vector<16x128xf32>
    %35 = arith.truncf %34 : vector<16x128xf32> to vector<16x128xbf16>
    %c0_20 = arith.constant 0 : index
    %c0_21 = arith.constant 0 : index
    %36 = vector.load %arg10[%c0_20, %c0_21] : memref<128x16xbf16, #tpu.memory_space<vmem>>, vector<128x16xbf16>
    %cst_22 = arith.constant dense<0.000000e+00> : vector<16x16xf32>
    %37 = tpu.matmul %35, %36, %cst_22 {dimension_numbers = #tpu.dot_dimension_numbers<[1], [0], [0], [1], [0, 0, 1, 1], [], []>} : vector<16x128xbf16>, vector<128x16xbf16>, vector<16x16xf32> -> vector<16x16xf32>
    %c0_23 = arith.constant 0 : index
    %c0_24 = arith.constant 0 : index
    %38 = vector.load %arg11[%c0_23, %c0_24] : memref<1x16xf32, #tpu.memory_space<vmem>>, vector<1x16xf32>
    %39 = vector.broadcast %38 : vector<1x16xf32> to vector<16x16xf32>
    %40 = arith.addf %37, %39 : vector<16x16xf32>
    %c0_25 = arith.constant 0 : index
    %c0_26 = arith.constant 0 : index
    %41 = memref.load %arg1[%c0_25, %c0_26] : memref<1x1xf32, #tpu.memory_space<smem>>
    %42 = vector.extract_strided_slice %40 {offsets = [0, 0], sizes = [16, 3], strides = [1, 1]} : vector<16x16xf32> to vector<16x3xf32>
    %43 = vector.broadcast %41 : f32 to vector<16x3xf32>
    %44 = arith.mulf %42, %43 : vector<16x3xf32>
    %cst_27 = arith.constant dense<0xFF800000> : vector<16xf32>
    %45 = vector.multi_reduction <maximumf>, %44, %cst_27 [1] : vector<16x3xf32> to vector<16xf32>
    %46 = vector.shape_cast %45 : vector<16xf32> to vector<16x1xf32>
    %47 = vector.broadcast %46 : vector<16x1xf32> to vector<16x3xf32>
    %48 = arith.subf %44, %47 : vector<16x3xf32>
    %49 = math.exp %48 : vector<16x3xf32>
    %cst_28 = arith.constant dense<0.000000e+00> : vector<16xf32>
    %50 = vector.multi_reduction <add>, %49, %cst_28 [1] : vector<16x3xf32> to vector<16xf32>
    %51 = vector.shape_cast %50 : vector<16xf32> to vector<16x1xf32>
    %52 = tpu.reciprocal %51 {approx = true} : vector<16x1xf32> -> vector<16x1xf32>
    %53 = vector.extract_strided_slice %40 {offsets = [0, 4], sizes = [16, 8], strides = [1, 1]} : vector<16x16xf32> to vector<16x8xf32>
    %54 = vector.broadcast %41 : f32 to vector<16x8xf32>
    %55 = arith.mulf %53, %54 : vector<16x8xf32>
    %cst_29 = arith.constant dense<0xFF800000> : vector<16xf32>
    %56 = vector.multi_reduction <maximumf>, %55, %cst_29 [1] : vector<16x8xf32> to vector<16xf32>
    %57 = vector.shape_cast %56 : vector<16xf32> to vector<16x1xf32>
    %58 = vector.broadcast %57 : vector<16x1xf32> to vector<16x8xf32>
    %59 = arith.subf %55, %58 : vector<16x8xf32>
    %60 = math.exp %59 : vector<16x8xf32>
    %cst_30 = arith.constant dense<0.000000e+00> : vector<16xf32>
    %61 = vector.multi_reduction <add>, %60, %cst_30 [1] : vector<16x8xf32> to vector<16xf32>
    %62 = vector.shape_cast %61 : vector<16xf32> to vector<16x1xf32>
    %63 = tpu.reciprocal %62 {approx = true} : vector<16x1xf32> -> vector<16x1xf32>
    %64 = arith.addf %52, %63 : vector<16x1xf32>
    %65 = vector.extract_strided_slice %40 {offsets = [0, 12], sizes = [16, 2], strides = [1, 1]} : vector<16x16xf32> to vector<16x2xf32>
    %66 = vector.broadcast %41 : f32 to vector<16x2xf32>
    %67 = arith.mulf %65, %66 : vector<16x2xf32>
    %cst_31 = arith.constant dense<0xFF800000> : vector<16xf32>
    %68 = vector.multi_reduction <maximumf>, %67, %cst_31 [1] : vector<16x2xf32> to vector<16xf32>
    %69 = vector.shape_cast %68 : vector<16xf32> to vector<16x1xf32>
    %70 = vector.broadcast %69 : vector<16x1xf32> to vector<16x2xf32>
    %71 = arith.subf %67, %70 : vector<16x2xf32>
    %72 = math.exp %71 : vector<16x2xf32>
    %cst_32 = arith.constant dense<0.000000e+00> : vector<16xf32>
    %73 = vector.multi_reduction <add>, %72, %cst_32 [1] : vector<16x2xf32> to vector<16xf32>
    %74 = vector.shape_cast %73 : vector<16xf32> to vector<16x1xf32>
    %75 = tpu.reciprocal %74 {approx = true} : vector<16x1xf32> -> vector<16x1xf32>
    %76 = arith.addf %64, %75 : vector<16x1xf32>
    %cst_33 = arith.constant 0.333333343 : f32
    %77 = vector.broadcast %cst_33 : f32 to vector<16x1xf32>
    %78 = arith.mulf %76, %77 : vector<16x1xf32>
    %79 = tpu.iota {dimensions = array<i32: 1>} : vector<16x16xi32>
    %c15_i32 = arith.constant 15 : i32
    %80 = vector.broadcast %c15_i32 : i32 to vector<16x16xi32>
    %81 = arith.cmpi eq, %79, %80 : vector<16x16xi32>
    %82 = vector.shape_cast %78 : vector<16x1xf32> to vector<16x1xf32>
    %83 = vector.broadcast %82 : vector<16x1xf32> to vector<16x16xf32>
    %84 = arith.select %81, %83, %40 : vector<16x16xi1>, vector<16x16xf32>
    %c0_34 = arith.constant 0 : index
    %c0_35 = arith.constant 0 : index
    %85 = vector.load %arg12[%c0_34, %c0_35] : memref<16x16xf32, #tpu.memory_space<vmem>>, vector<16x16xf32>
    tpu.vector_store %arg12[%c0_34, %c0_35], %84 {strides = array<i32>} : memref<16x16xf32, #tpu.memory_space<vmem>>, vector<16x16xf32>,
    return
  }
  func.func @transform_0(%arg0: i32) -> (i32, i32) {
    %c0_i32 = arith.constant 0 : i32
    %c0_i32_0 = arith.constant 0 : i32
    %c0_i32_1 = arith.constant 0 : i32
    return %c0_i32, %c0_i32_0 : i32, i32
  }
  func.func @transform_1(%arg0: i32) -> (i32, i32) {
    %c0_i32 = arith.constant 0 : i32
    %c0_i32_0 = arith.constant 0 : i32
    return %arg0, %c0_i32 : i32, i32
  }
  func.func @transform_2(%arg0: i32) -> (i32, i32) {
    %c0_i32 = arith.constant 0 : i32
    %c0_i32_0 = arith.constant 0 : i32
    return %arg0, %c0_i32 : i32, i32
  }
  func.func @transform_3(%arg0: i32) -> (i32, i32) {
    %c0_i32 = arith.constant 0 : i32
    %c0_i32_0 = arith.constant 0 : i32
    return %arg0, %c0_i32 : i32, i32
  }
  func.func @transform_4(%arg0: i32) -> (i32, i32) {
    %c0_i32 = arith.constant 0 : i32
    %c0_i32_0 = arith.constant 0 : i32
    %c0_i32_1 = arith.constant 0 : i32
    return %c0_i32, %c0_i32_0 : i32, i32
  }
  func.func @transform_5(%arg0: i32) -> (i32, i32) {
    %c0_i32 = arith.constant 0 : i32
    %c0_i32_0 = arith.constant 0 : i32
    %c0_i32_1 = arith.constant 0 : i32
    return %c0_i32, %c0_i32_0 : i32, i32
  }
  func.func @transform_6(%arg0: i32) -> (i32, i32) {
    %c0_i32 = arith.constant 0 : i32
    %c0_i32_0 = arith.constant 0 : i32
    %c0_i32_1 = arith.constant 0 : i32
    return %c0_i32, %c0_i32_0 : i32, i32
  }
  func.func @transform_7(%arg0: i32) -> (i32, i32) {
    %c0_i32 = arith.constant 0 : i32
    %c0_i32_0 = arith.constant 0 : i32
    %c0_i32_1 = arith.constant 0 : i32
    return %c0_i32, %c0_i32_0 : i32, i32
  }
  func.func @transform_8(%arg0: i32) -> (i32, i32) {
    %c0_i32 = arith.constant 0 : i32
    %c0_i32_0 = arith.constant 0 : i32
    %c0_i32_1 = arith.constant 0 : i32
    return %c0_i32, %c0_i32_0 : i32, i32
  }
  func.func @transform_9(%arg0: i32) -> (i32, i32) {
    %c0_i32 = arith.constant 0 : i32
    %c0_i32_0 = arith.constant 0 : i32
    %c0_i32_1 = arith.constant 0 : i32
    return %c0_i32, %c0_i32_0 : i32, i32
  }
  func.func @transform_10(%arg0: i32) -> (i32, i32) {
    %c0_i32 = arith.constant 0 : i32
    %c0_i32_0 = arith.constant 0 : i32
    %c0_i32_1 = arith.constant 0 : i32
    return %c0_i32, %c0_i32_0 : i32, i32
  }
  func.func @transform_11(%arg0: i32) -> (i32, i32) {
    %c0_i32 = arith.constant 0 : i32
    %c0_i32_0 = arith.constant 0 : i32
    return %arg0, %c0_i32 : i32, i32
  }
}

</mosaic_0001>

<llo_original>
// kernel: tpu_custom_call.1
$region0: #{tpu_custom_call.1}
  #allocation0 [shape = 'u32[]', space=smem, size = 0x4, offset = 0x4, fixed_abs, tag = 'smem constant byte address 0x4 - core index']
  #allocation1 [shape = 'u32[144,128]{1,0:T(1,128)}', space=vmem, size = 0x12000, scoped, tag = 'internal scratch']
  #allocation2 [shape = 'f32[1,1]{1,0:T(1,128)S(6)}', space=smem, size = 0x200, scoped, tag = 'scoped memory for tpu_custom_call.1']
  %s0 = inlined_call_operand.<no memory space> [shape: f32[1,1], index: 0, kind: input, shape index: {}]
  %s1 = inlined_call_operand.vmem [shape: bf16[2,8], index: 1, kind: input, shape index: {}]
  %s2 = inlined_call_operand.vmem [shape: bf16[2,2], index: 2, kind: input, shape index: {}]
  %s3 = inlined_call_operand.vmem [shape: bf16[2,3], index: 3, kind: input, shape index: {}]
  %s4 = inlined_call_operand.vmem [shape: bf16[8,384], index: 4, kind: input, shape index: {}]
  %s5 = inlined_call_operand.vmem [shape: bf16[2,384], index: 5, kind: input, shape index: {}]
  %s6 = inlined_call_operand.vmem [shape: bf16[3,384], index: 6, kind: input, shape index: {}]
  %s7 = inlined_call_operand.vmem [shape: f32[1,384], index: 7, kind: input, shape index: {}]
  %s8 = inlined_call_operand.vmem [shape: f32[1,128], index: 8, kind: input, shape index: {}]
  %s9 = inlined_call_operand.vmem [shape: bf16[128,16], index: 9, kind: input, shape index: {}]
  %s10 = inlined_call_operand.vmem [shape: f32[1,16], index: 10, kind: input, shape index: {}]
  %s11 = inlined_call_operand.hbm [shape: f32[2,16], index: 11, kind: output, shape index: {}]
  %s12 = sld [smem:[#allocation0]]
  $region54: #{tpu_custom_call.1} parent=0
    _
  %s14 = ssub.s32 1, %s12
  %s15 = scalar_select 0, %s14, %s12
  %16 = sst [smem:[#allocation2]] %s0
  $region1: #{tpu_custom_call.1} parent=0
    #allocation3 [shape = 'u8[8192]{0}', space=vmem, size = 0x2000, scoped, tag = 'output window, operand 0, single buffered']
    #allocation4 [shape = 's32[1]{0}', space=sflag, size = 0x4, scoped, tag = 'scoped memory for tpu_custom_call.1']
    %17 = vsyncpa [#allocation4], 0
    // Predicated region
    $region2: #{tpu_custom_call.1} parent=1 // pred_check
      _
    $region3: #{tpu_custom_call.1} parent=1 // pred_check_branch
      %19 = sbr.rel (0) target = $region5
    $region4: #{tpu_custom_call.1} parent=1 // pred_region
      _
    $region5: #{tpu_custom_call.1} parent=1 // pred_fallthru
      _
    // Predicated region
    $region6: #{tpu_custom_call.1} parent=1 // pred_check
      _
    $region7: #{tpu_custom_call.1} parent=1 // pred_check_branch
      %21 = sbr.rel (0) target = $region9
    $region8: #{tpu_custom_call.1} parent=1 // pred_region
      _
    $region9: #{tpu_custom_call.1} parent=1 // pred_fallthru
      _
    // Predicated region
    $region10: #{tpu_custom_call.1} parent=1 // pred_check
      _
    $region11: #{tpu_custom_call.1} parent=1 // pred_check_branch
      %23 = sbr.rel (0) target = $region13
    $region12: #{tpu_custom_call.1} parent=1 // pred_region
      _
    $region13: #{tpu_custom_call.1} parent=1 // pred_fallthru
      _
    // Predicated region
    $region14: #{tpu_custom_call.1} parent=1 // pred_check
      _
    $region15: #{tpu_custom_call.1} parent=1 // pred_check_branch
      %25 = sbr.rel (0) target = $region17
    $region16: #{tpu_custom_call.1} parent=1 // pred_region
      _
    $region17: #{tpu_custom_call.1} parent=1 // pred_fallthru
      _
    // Predicated region
    $region18: #{tpu_custom_call.1} parent=1 // pred_check
      _
    $region19: #{tpu_custom_call.1} parent=1 // pred_check_branch
      %27 = sbr.rel (0) target = $region21
    $region20: #{tpu_custom_call.1} parent=1 // pred_region
      _
    $region21: #{tpu_custom_call.1} parent=1 // pred_fallthru
      _
    // Predicated region
    $region22: #{tpu_custom_call.1} parent=1 // pred_check
      _
    $region23: #{tpu_custom_call.1} parent=1 // pred_check_branch
      %29 = sbr.rel (0) target = $region25
    $region24: #{tpu_custom_call.1} parent=1 // pred_region
      _
    $region25: #{tpu_custom_call.1} parent=1 // pred_fallthru
      _
    // Predicated region
    $region26: #{tpu_custom_call.1} parent=1 // pred_check
      _
    $region27: #{tpu_custom_call.1} parent=1 // pred_check_branch
      %31 = sbr.rel (0) target = $region29
    $region28: #{tpu_custom_call.1} parent=1 // pred_region
      _
    $region29: #{tpu_custom_call.1} parent=1 // pred_fallthru
      _
    // Predicated region
    $region30: #{tpu_custom_call.1} parent=1 // pred_check
      _
    $region31: #{tpu_custom_call.1} parent=1 // pred_check_branch
      %33 = sbr.rel (0) target = $region33
    $region32: #{tpu_custom_call.1} parent=1 // pred_region
      _
    $region33: #{tpu_custom_call.1} parent=1 // pred_fallthru
      _
    // Predicated region
    $region34: #{tpu_custom_call.1} parent=1 // pred_check
      _
    $region35: #{tpu_custom_call.1} parent=1 // pred_check_branch
      %35 = sbr.rel (0) target = $region37
    $region36: #{tpu_custom_call.1} parent=1 // pred_region
      _
    $region37: #{tpu_custom_call.1} parent=1 // pred_fallthru
      _
    // Predicated region
    $region38: #{tpu_custom_call.1} parent=1 // pred_check
      _
    $region39: #{tpu_custom_call.1} parent=1 // pred_check_branch
      %37 = sbr.rel (0) target = $region41
    $region40: #{tpu_custom_call.1} parent=1 // pred_region
      _
    $region41: #{tpu_custom_call.1} parent=1 // pred_fallthru
      _
    // Predicated region
    $region42: #{tpu_custom_call.1} parent=1 // pred_check
      _
    $region43: #{tpu_custom_call.1} parent=1 // pred_check_branch
      %39 = sbr.rel (0) target = $region45
    $region44: #{tpu_custom_call.1} parent=1 // pred_region
      _
    $region45: #{tpu_custom_call.1} parent=1 // pred_fallthru
      _
    %v41 = vld [vmem:[%s1] sm:$0x1]
    %v42 = vld [vmem:[%s1 + $0x1] sm:$0x1]
    %v43 = vld [vmem:[%s1 + $0x2] sm:$0x1]
    %v44 = vld [vmem:[%s1 + $0x3] sm:$0x1]
    %v45 = vld [vmem:[%s1 + $0x4] sm:$0x1]
    %v46 = vld [vmem:[%s1 + $0x5] sm:$0x1]
    %v47 = vld [vmem:[%s1 + $0x6] sm:$0x1]
    %v48 = vld [vmem:[%s1 + $0x7] sm:$0x1]
    %v49 = vld [vmem:[%s4] sm:$0xff]
    %v50 = vld [vmem:[%s4 + $0x8] sm:$0xf]
    %v51 = vld [vmem:[%s2] sm:$0x1]
    %v52 = vld [vmem:[%s2 + $0x1] sm:$0x1]
    %v53 = vld [vmem:[%s2 + $0x2] sm:$0x1]
    %v54 = vld [vmem:[%s2 + $0x3] sm:$0x1]
    %v55 = vld [vmem:[%s2 + $0x4] sm:$0x1]
    %v56 = vld [vmem:[%s2 + $0x5] sm:$0x1]
    %v57 = vld [vmem:[%s2 + $0x6] sm:$0x1]
    %v58 = vld [vmem:[%s2 + $0x7] sm:$0x1]
    %v59 = vld [vmem:[%s5] sm:$0x7]
    %v68 = vcombine.low %v51, %v52
    %v69 = vcombine.low %v53, %v54
    %v70 = vcombine.low %v55, %v56
    %v71 = vcombine.low %v57, %v58
    %v73 = vunpack.c.l.s4 1966171168
    %v74 = vunpack.c.0.s8 %v73
    %v75 = vlaneseq
    %v76 = vshrl.u32 %v75, 7
    %v77 = vsub.s32 %v74, %v76
    %v78 = vrot.slane %v68, %v77
    %v80 = vunpack.c.l.s4 1966171168
    %v81 = vunpack.c.0.s8 %v80
    %v82 = vlaneseq
    %v83 = vshrl.u32 %v82, 7
    %v84 = vsub.s32 %v81, %v83
    %v85 = vrot.slane %v69, %v84
    %v87 = vunpack.c.l.s4 1966171168
    %v88 = vunpack.c.0.s8 %v87
    %v89 = vlaneseq
    %v90 = vshrl.u32 %v89, 7
    %v91 = vsub.s32 %v88, %v90
    %v92 = vrot.slane %v70, %v91
    %v94 = vunpack.c.l.s4 1966171168
    %v95 = vunpack.c.0.s8 %v94
    %v96 = vlaneseq
    %v97 = vshrl.u32 %v96, 7
    %v98 = vsub.s32 %v95, %v97
    %v99 = vrot.slane %v71, %v98
    %v100 = vcombine.low %v78, %v85
    %v101 = vcombine.low %v92, %v99
    %v103 = vunpack.c.l.s4 1966171168
    %v104 = vunpack.c.0.s8 %v103
    %v105 = vlaneseq
    %v106 = vshrl.u32 %v105, 7
    %v107 = vsub.s32 %v104, %v106
    %v108 = vrot.slane %v100, %v107
    %v110 = vunpack.c.l.s4 1966171168
    %v111 = vunpack.c.0.s8 %v110
    %v112 = vlaneseq
    %v113 = vshrl.u32 %v112, 7
    %v114 = vsub.s32 %v111, %v113
    %v115 = vrot.slane %v101, %v114
    %v116 = vcombine.low %v108, %v115
    %v119 = vunpack.c.l.s4 1966171168
    %v120 = vunpack.c.0.s8 %v119
    %v121 = vlaneseq
    %v122 = vshrl.u32 %v121, 7
    %v123 = vsub.s32 %v120, %v122
    %v124 = vrot.slane %v59, %v123
    %v125 = vcombine.high %v124, %v124
    %v127 = vunpack.c.l.s4 1966171168
    %v128 = vunpack.c.0.s8 %v127
    %v129 = vlaneseq
    %v130 = vshrl.u32 %v129, 7
    %v131 = vsub.s32 %v128, %v130
    %v132 = vrot.slane %v124, %v131
    %v134 = vunpack.c.l.s4 1966171168
    %v135 = vunpack.c.0.s8 %v134
    %v136 = vlaneseq
    %v137 = vshrl.u32 %v136, 7
    %v138 = vsub.s32 %v135, %v137
    %v139 = vrot.slane %v125, %v138
    %v140 = vcombine.high %v132, %v132
    %vm141 = vcmask 15360
    %v143 = vsel %vm141, %v116, 0
    %vm145 = vcmask 1040384
    %v147 = vsel %vm145, %v132, 0
    %v150 = vsel %vm145, %v139, 0
    %v153 = vsel %vm145, %v140, 0
    %155 = vmatprep.subr.bf16.mxu0 0
    %156 = vmatpush1.bf16.msra.mxu0 0
    %157 = vmatprep.subr.bf16.mxu0 0
    %158 = vmatpush1.bf16.msra.mxu0 0
    %159 = vmatprep.subr.bf16.mxu0 0
    %160 = vmatpush1.bf16.msra.mxu0 0
    %161 = vmatprep.subr.bf16.mxu0 0
    %162 = vmatpush1.bf16.msra.mxu0 0
    %163 = vmatprep.subr.bf16.mxu0 0
    %164 = vmatpush1.bf16.msra.mxu0 0
    %165 = vmatprep.subr.bf16.mxu0 0
    %166 = vmatpush1.bf16.msra.mxu0 0
    %167 = vmatprep.subr.bf16.mxu0 0
    %168 = vmatpush1.bf16.msra.mxu0 0
    %169 = vmatprep.subr.bf16.mxu0 %v150
    %170 = vmatpush1.bf16.msra.mxu0 %v147
    %171 = vmatprep.subr.bf16.mxu0 0
    %172 = vmatpush2.bf16.msra.mxu0 0
    %173 = vmatprep.subr.bf16.mxu0 0
    %174 = vmatpush2.bf16.msra.mxu0 0
    %175 = vmatprep.subr.bf16.mxu0 0
    %176 = vmatpush2.bf16.msra.mxu0 0
    %177 = vmatprep.subr.bf16.mxu0 0
    %178 = vmatpush2.bf16.msra.mxu0 0
    %179 = vmatprep.subr.bf16.mxu0 0
    %180 = vmatpush2.bf16.msra.mxu0 0
    %181 = vmatprep.subr.bf16.mxu0 0
    %182 = vmatpush2.bf16.msra.mxu0 0
    %183 = vmatprep.subr.bf16.mxu0 0
    %184 = vmatpush2.bf16.msra.mxu0 0
    %185 = vmatprep.subr.bf16.mxu0 0
    %186 = vmatpush2.bf16.msra.mxu0 0
    %187 = vmatprep.mubr.bf16.mxu0 0
    %188 = vmatmul.mubr.bf16.gmra.mxu0 %v143
    %v189 = vpop.f32.mrf.mxu0
    %v190 = vadd.f32 0.0, %v189
    %v191 = vpop.f32.mrf.mxu0
    %v192 = vadd.f32 0.0, %v191
    %v193 = vpop.f32.mrf.mxu0
    %v194 = vadd.f32 0.0, %v193
    %v195 = vpop.f32.mrf.mxu0
    %v196 = vadd.f32 0.0, %v195
    %197 = vdwg.mxu0
    %198 = vmatprep.subr.bf16.mxu0 0
    %199 = vmatpush1.bf16.msra.mxu0 0
    %200 = vmatprep.subr.bf16.mxu0 0
    %201 = vmatpush1.bf16.msra.mxu0 0
    %202 = vmatprep.subr.bf16.mxu0 0
    %203 = vmatpush1.bf16.msra.mxu0 0
    %204 = vmatprep.subr.bf16.mxu0 0
    %205 = vmatpush1.bf16.msra.mxu0 0
    %206 = vmatprep.subr.bf16.mxu0 0
    %207 = vmatpush1.bf16.msra.mxu0 0
    %208 = vmatprep.subr.bf16.mxu0 0
    %209 = vmatpush1.bf16.msra.mxu0 0
    %210 = vmatprep.subr.bf16.mxu0 0
    %211 = vmatpush1.bf16.msra.mxu0 0
    %212 = vmatprep.subr.bf16.mxu0 0
    %213 = vmatpush1.bf16.msra.mxu0 %v153
    %214 = vmatprep.subr.bf16.mxu0 0
    %215 = vmatpush2.bf16.msra.mxu0 0
    %216 = vmatprep.subr.bf16.mxu0 0
    %217 = vmatpush2.bf16.msra.mxu0 0
    %218 = vmatprep.subr.bf16.mxu0 0
    %219 = vmatpush2.bf16.msra.mxu0 0
    %220 = vmatprep.subr.bf16.mxu0 0
    %221 = vmatpush2.bf16.msra.mxu0 0
    %222 = vmatprep.subr.bf16.mxu0 0
    %223 = vmatpush2.bf16.msra.mxu0 0
    %224 = vmatprep.subr.bf16.mxu0 0
    %225 = vmatpush2.bf16.msra.mxu0 0
    %226 = vmatprep.subr.bf16.mxu0 0
    %227 = vmatpush2.bf16.msra.mxu0 0
    %228 = vmatprep.subr.bf16.mxu0 0
    %229 = vmatpush2.bf16.msra.mxu0 0
    %230 = vmatprep.mubr.bf16.mxu0 0
    %231 = vmatmul.mubr.bf16.gmra.mxu0 %v143
    %v232 = vpop.f32.mrf.mxu0
    %v233 = vadd.f32 0.0, %v232
    %v234 = vpop.f32.mrf.mxu0
    %v235 = vpop.f32.mrf.mxu0
    %v236 = vadd.f32 0.0, %v235
    %v237 = vpop.f32.mrf.mxu0
    %238 = vdwg.mxu0
    %v247 = vcombine.low %v41, %v42
    %v248 = vcombine.low %v43, %v44
    %v249 = vcombine.low %v45, %v46
    %v250 = vcombine.low %v47, %v48
    %v252 = vunpack.c.l.s4 1966171168
    %v253 = vunpack.c.0.s8 %v252
    %v254 = vlaneseq
    %v255 = vshrl.u32 %v254, 7
    %v256 = vsub.s32 %v253, %v255
    %v257 = vrot.slane %v247, %v256
    %v259 = vunpack.c.l.s4 1966171168
    %v260 = vunpack.c.0.s8 %v259
    %v261 = vlaneseq
    %v262 = vshrl.u32 %v261, 7
    %v263 = vsub.s32 %v260, %v262
    %v264 = vrot.slane %v248, %v263
    %v266 = vunpack.c.l.s4 1966171168
    %v267 = vunpack.c.0.s8 %v266
    %v268 = vlaneseq
    %v269 = vshrl.u32 %v268, 7
    %v270 = vsub.s32 %v267, %v269
    %v271 = vrot.slane %v249, %v270
    %v273 = vunpack.c.l.s4 1966171168
    %v274 = vunpack.c.0.s8 %v273
    %v275 = vlaneseq
    %v276 = vshrl.u32 %v275, 7
    %v277 = vsub.s32 %v274, %v276
    %v278 = vrot.slane %v250, %v277
    %v279 = vcombine.low %v257, %v264
    %v280 = vcombine.low %v271, %v278
    %v282 = vunpack.c.l.s4 1966171168
    %v283 = vunpack.c.0.s8 %v282
    %v284 = vlaneseq
    %v285 = vshrl.u32 %v284, 7
    %v286 = vsub.s32 %v283, %v285
    %v287 = vrot.slane %v279, %v286
    %v289 = vunpack.c.l.s4 1966171168
    %v290 = vunpack.c.0.s8 %v289
    %v291 = vlaneseq
    %v292 = vshrl.u32 %v291, 7
    %v293 = vsub.s32 %v290, %v292
    %v294 = vrot.slane %v280, %v293
    %v295 = vcombine.low %v287, %v294
    %v298 = vunpack.c.l.b16 %v49
    %v299 = vunpack.c.h.b16 %v49
    %v300 = vunpack.c.l.b16 %v50
    %v301 = vpack.c.b16 %v298, %v298
    %v302 = vpack.c.b16 %v299, %v299
    %v303 = vpack.c.b16 %v300, %v300
    %vm304 = vcmask 64512
    %v306 = vsel %vm304, %v295, 0
    %vm308 = vcmask 1043456
    %v310 = vsel %vm308, %v301, 0
    %v313 = vsel %vm308, %v302, 0
    %v316 = vsel %vm308, %v303, 0
    %318 = vmatprep.subr.bf16.mxu0 0
    %319 = vmatpush1.bf16.msra.mxu0 0
    %320 = vmatprep.subr.bf16.mxu0 0
    %321 = vmatpush1.bf16.msra.mxu0 0
    %322 = vmatprep.subr.bf16.mxu0 0
    %323 = vmatpush1.bf16.msra.mxu0 0
    %324 = vmatprep.subr.bf16.mxu0 0
    %325 = vmatpush1.bf16.msra.mxu0 0
    %326 = vmatprep.subr.bf16.mxu0 0
    %327 = vmatpush1.bf16.msra.mxu0 0
    %328 = vmatprep.subr.bf16.mxu0 0
    %329 = vmatpush1.bf16.msra.mxu0 0
    %330 = vmatprep.subr.bf16.mxu0 0
    %331 = vmatpush1.bf16.msra.mxu0 0
    %332 = vmatprep.subr.bf16.mxu0 %v313
    %333 = vmatpush1.bf16.msra.mxu0 %v310
    %334 = vmatprep.subr.bf16.mxu0 0
    %335 = vmatpush2.bf16.msra.mxu0 0
    %336 = vmatprep.subr.bf16.mxu0 0
    %337 = vmatpush2.bf16.msra.mxu0 0
    %338 = vmatprep.subr.bf16.mxu0 0
    %339 = vmatpush2.bf16.msra.mxu0 0
    %340 = vmatprep.subr.bf16.mxu0 0
    %341 = vmatpush2.bf16.msra.mxu0 0
    %342 = vmatprep.subr.bf16.mxu0 0
    %343 = vmatpush2.bf16.msra.mxu0 0
    %344 = vmatprep.subr.bf16.mxu0 0
    %345 = vmatpush2.bf16.msra.mxu0 0
    %346 = vmatprep.subr.bf16.mxu0 0
    %347 = vmatpush2.bf16.msra.mxu0 0
    %348 = vmatprep.subr.bf16.mxu0 0
    %349 = vmatpush2.bf16.msra.mxu0 0
    %350 = vmatprep.mubr.bf16.mxu0 0
    %351 = vmatmul.mubr.bf16.gmra.mxu0 %v306
    %v352 = vpop.f32.mrf.mxu0
    %v353 = vadd.f32 %v190, %v352
    %v354 = vpop.f32.mrf.mxu0
    %v355 = vadd.f32 %v192, %v354
    %v356 = vpop.f32.mrf.mxu0
    %v357 = vadd.f32 %v194, %v356
    %v358 = vpop.f32.mrf.mxu0
    %v359 = vadd.f32 %v196, %v358
    %360 = vdwg.mxu0
    %361 = vmatprep.subr.bf16.mxu0 0
    %362 = vmatpush1.bf16.msra.mxu0 0
    %363 = vmatprep.subr.bf16.mxu0 0
    %364 = vmatpush1.bf16.msra.mxu0 0
    %365 = vmatprep.subr.bf16.mxu0 0
    %366 = vmatpush1.bf16.msra.mxu0 0
    %367 = vmatprep.subr.bf16.mxu0 0
    %368 = vmatpush1.bf16.msra.mxu0 0
    %369 = vmatprep.subr.bf16.mxu0 0
    %370 = vmatpush1.bf16.msra.mxu0 0
    %371 = vmatprep.subr.bf16.mxu0 0
    %372 = vmatpush1.bf16.msra.mxu0 0
    %373 = vmatprep.subr.bf16.mxu0 0
    %374 = vmatpush1.bf16.msra.mxu0 0
    %375 = vmatprep.subr.bf16.mxu0 0
    %376 = vmatpush1.bf16.msra.mxu0 %v316
    %377 = vmatprep.subr.bf16.mxu0 0
    %378 = vmatpush2.bf16.msra.mxu0 0
    %379 = vmatprep.subr.bf16.mxu0 0
    %380 = vmatpush2.bf16.msra.mxu0 0
    %381 = vmatprep.subr.bf16.mxu0 0
    %382 = vmatpush2.bf16.msra.mxu0 0
    %383 = vmatprep.subr.bf16.mxu0 0
    %384 = vmatpush2.bf16.msra.mxu0 0
    %385 = vmatprep.subr.bf16.mxu0 0
    %386 = vmatpush2.bf16.msra.mxu0 0
    %387 = vmatprep.subr.bf16.mxu0 0
    %388 = vmatpush2.bf16.msra.mxu0 0
    %389 = vmatprep.subr.bf16.mxu0 0
    %390 = vmatpush2.bf16.msra.mxu0 0
    %391 = vmatprep.subr.bf16.mxu0 0
    %392 = vmatpush2.bf16.msra.mxu0 0
    %393 = vmatprep.mubr.bf16.mxu0 0
    %394 = vmatmul.mubr.bf16.gmra.mxu0 %v306
    %v395 = vpop.f32.mrf.mxu0
    %v396 = vadd.f32 %v233, %v395
    %v397 = vpop.f32.mrf.mxu0
    %v398 = vpop.f32.mrf.mxu0
    %v399 = vadd.f32 %v236, %v398
    %v400 = vpop.f32.mrf.mxu0
    %401 = vdwg.mxu0
    %v402 = vld [vmem:[%s3] sm:$0x1]
    %v403 = vld [vmem:[%s3 + $0x1] sm:$0x1]
    %v404 = vld [vmem:[%s3 + $0x2] sm:$0x1]
    %v405 = vld [vmem:[%s3 + $0x3] sm:$0x1]
    %v406 = vld [vmem:[%s3 + $0x4] sm:$0x1]
    %v407 = vld [vmem:[%s3 + $0x5] sm:$0x1]
    %v408 = vld [vmem:[%s3 + $0x6] sm:$0x1]
    %v409 = vld [vmem:[%s3 + $0x7] sm:$0x1]
    %v410 = vld [vmem:[%s6] sm:$0x3f]
    %v419 = vcombine.low %v402, %v403
    %v420 = vcombine.low %v404, %v405
    %v421 = vcombine.low %v406, %v407
    %v422 = vcombine.low %v408, %v409
    %v424 = vunpack.c.l.s4 1966171168
    %v425 = vunpack.c.0.s8 %v424
    %v426 = vlaneseq
    %v427 = vshrl.u32 %v426, 7
    %v428 = vsub.s32 %v425, %v427
    %v429 = vrot.slane %v419, %v428
    %v431 = vunpack.c.l.s4 1966171168
    %v432 = vunpack.c.0.s8 %v431
    %v433 = vlaneseq
    %v434 = vshrl.u32 %v433, 7
    %v435 = vsub.s32 %v432, %v434
    %v436 = vrot.slane %v420, %v435
    %v438 = vunpack.c.l.s4 1966171168
    %v439 = vunpack.c.0.s8 %v438
    %v440 = vlaneseq
    %v441 = vshrl.u32 %v440, 7
    %v442 = vsub.s32 %v439, %v441
    %v443 = vrot.slane %v421, %v442
    %v445 = vunpack.c.l.s4 1966171168
    %v446 = vunpack.c.0.s8 %v445
    %v447 = vlaneseq
    %v448 = vshrl.u32 %v447, 7
    %v449 = vsub.s32 %v446, %v448
    %v450 = vrot.slane %v422, %v449
    %v451 = vcombine.low %v429, %v436
    %v452 = vcombine.low %v443, %v450
    %v454 = vunpack.c.l.s4 1966171168
    %v455 = vunpack.c.0.s8 %v454
    %v456 = vlaneseq
    %v457 = vshrl.u32 %v456, 7
    %v458 = vsub.s32 %v455, %v457
    %v459 = vrot.slane %v451, %v458
    %v461 = vunpack.c.l.s4 1966171168
    %v462 = vunpack.c.0.s8 %v461
    %v463 = vlaneseq
    %v464 = vshrl.u32 %v463, 7
    %v465 = vsub.s32 %v462, %v464
    %v466 = vrot.slane %v452, %v465
    %v467 = vcombine.low %v459, %v466
    %v469 = vcombine.high %v410, %v410
    %v471 = vunpack.c.l.s4 1983009808
    %v472 = vunpack.c.0.s8 %v471
    %v473 = vlaneseq
    %v474 = vshrl.u32 %v473, 7
    %v475 = vsub.s32 %v472, %v474
    %v476 = vrot.slane %v410, %v475
    %v478 = vunpack.c.l.s4 1983009808
    %v479 = vunpack.c.0.s8 %v478
    %v480 = vlaneseq
    %v481 = vshrl.u32 %v480, 7
    %v482 = vsub.s32 %v479, %v481
    %v483 = vrot.slane %v469, %v482
    %v484 = vcombine.high %v476, %v476
    %vm485 = vcmask 23552
    %v487 = vsel %vm485, %v467, 0
    %vm489 = vcmask 1041408
    %v490 = vsel %vm145, 4294967295, 65535
    %v491 = vsel %vm489, %v490, 0
    %v493 = vand.u32 %v476, %v491
    %v496 = vand.u32 %v484, %v491
    %v499 = vand.u32 %v483, %v491
    %501 = vmatprep.subr.bf16.mxu0 0
    %502 = vmatpush1.bf16.msra.mxu0 0
    %503 = vmatprep.subr.bf16.mxu0 0
    %504 = vmatpush1.bf16.msra.mxu0 0
    %505 = vmatprep.subr.bf16.mxu0 0
    %506 = vmatpush1.bf16.msra.mxu0 0
    %507 = vmatprep.subr.bf16.mxu0 0
    %508 = vmatpush1.bf16.msra.mxu0 0
    %509 = vmatprep.subr.bf16.mxu0 0
    %510 = vmatpush1.bf16.msra.mxu0 0
    %511 = vmatprep.subr.bf16.mxu0 0
    %512 = vmatpush1.bf16.msra.mxu0 0
    %513 = vmatprep.subr.bf16.mxu0 0
    %514 = vmatpush1.bf16.msra.mxu0 0
    %515 = vmatprep.subr.bf16.mxu0 %v496
    %516 = vmatpush1.bf16.msra.mxu0 %v493
    %517 = vmatprep.subr.bf16.mxu0 0
    %518 = vmatpush2.bf16.msra.mxu0 0
    %519 = vmatprep.subr.bf16.mxu0 0
    %520 = vmatpush2.bf16.msra.mxu0 0
    %521 = vmatprep.subr.bf16.mxu0 0
    %522 = vmatpush2.bf16.msra.mxu0 0
    %523 = vmatprep.subr.bf16.mxu0 0
    %524 = vmatpush2.bf16.msra.mxu0 0
    %525 = vmatprep.subr.bf16.mxu0 0
    %526 = vmatpush2.bf16.msra.mxu0 0
    %527 = vmatprep.subr.bf16.mxu0 0
    %528 = vmatpush2.bf16.msra.mxu0 0
    %529 = vmatprep.subr.bf16.mxu0 0
    %530 = vmatpush2.bf16.msra.mxu0 0
    %531 = vmatprep.subr.bf16.mxu0 0
    %532 = vmatpush2.bf16.msra.mxu0 0
    %533 = vmatprep.mubr.bf16.mxu0 0
    %534 = vmatmul.mubr.bf16.gmra.mxu0 %v487
    %v535 = vpop.f32.mrf.mxu0
    %v536 = vadd.f32 0.0, %v535
    %v537 = vpop.f32.mrf.mxu0
    %v538 = vadd.f32 0.0, %v537
    %v539 = vpop.f32.mrf.mxu0
    %v540 = vadd.f32 0.0, %v539
    %v541 = vpop.f32.mrf.mxu0
    %v542 = vadd.f32 0.0, %v541
    %543 = vdwg.mxu0
    %544 = vmatprep.subr.bf16.mxu0 0
    %545 = vmatpush1.bf16.msra.mxu0 0
    %546 = vmatprep.subr.bf16.mxu0 0
    %547 = vmatpush1.bf16.msra.mxu0 0
    %548 = vmatprep.subr.bf16.mxu0 0
    %549 = vmatpush1.bf16.msra.mxu0 0
    %550 = vmatprep.subr.bf16.mxu0 0
    %551 = vmatpush1.bf16.msra.mxu0 0
    %552 = vmatprep.subr.bf16.mxu0 0
    %553 = vmatpush1.bf16.msra.mxu0 0
    %554 = vmatprep.subr.bf16.mxu0 0
    %555 = vmatpush1.bf16.msra.mxu0 0
    %556 = vmatprep.subr.bf16.mxu0 0
    %557 = vmatpush1.bf16.msra.mxu0 0
    %558 = vmatprep.subr.bf16.mxu0 0
    %559 = vmatpush1.bf16.msra.mxu0 %v499
    %560 = vmatprep.subr.bf16.mxu0 0
    %561 = vmatpush2.bf16.msra.mxu0 0
    %562 = vmatprep.subr.bf16.mxu0 0
    %563 = vmatpush2.bf16.msra.mxu0 0
    %564 = vmatprep.subr.bf16.mxu0 0
    %565 = vmatpush2.bf16.msra.mxu0 0
    %566 = vmatprep.subr.bf16.mxu0 0
    %567 = vmatpush2.bf16.msra.mxu0 0
    %568 = vmatprep.subr.bf16.mxu0 0
    %569 = vmatpush2.bf16.msra.mxu0 0
    %570 = vmatprep.subr.bf16.mxu0 0
    %571 = vmatpush2.bf16.msra.mxu0 0
    %572 = vmatprep.subr.bf16.mxu0 0
    %573 = vmatpush2.bf16.msra.mxu0 0
    %574 = vmatprep.subr.bf16.mxu0 0
    %575 = vmatpush2.bf16.msra.mxu0 0
    %576 = vmatprep.mubr.bf16.mxu0 0
    %577 = vmatmul.mubr.bf16.gmra.mxu0 %v487
    %v578 = vpop.f32.mrf.mxu0
    %v579 = vadd.f32 0.0, %v578
    %v580 = vpop.f32.mrf.mxu0
    %v581 = vpop.f32.mrf.mxu0
    %v582 = vadd.f32 0.0, %v581
    %v583 = vpop.f32.mrf.mxu0
    %584 = vdwg.mxu0
    %v585 = vadd.f32 %v353, %v536
    %v586 = vadd.f32 %v355, %v538
    %v587 = vadd.f32 %v396, %v579
    %v588 = vadd.f32 %v357, %v540
    %v589 = vadd.f32 %v359, %v542
    %v590 = vadd.f32 %v399, %v582
    %v591 = vld [vmem:[%s7] sm:$0x7]
    %v593 = vlaneseq
    %v594 = vshrl.u32 %v593, 7
    %v595 = vsub.s32 0, %v594
    %v596 = vrot.slane %v591, %v595
    %v597 = vlaneseq
    %v598 = vshrl.u32 %v597, 7
    %v599 = vsub.s32 1, %v598
    %v600 = vrot.slane %v591, %v599
    %v601 = vlaneseq
    %v602 = vshrl.u32 %v601, 7
    %v603 = vsub.s32 2, %v602
    %v604 = vrot.slane %v591, %v603
    %v608 = vadd.f32 %v585, %v596
    %v609 = vadd.f32 %v586, %v600
    %v610 = vadd.f32 %v587, %v604
    %v611 = vadd.f32 %v588, %v596
    %v612 = vadd.f32 %v589, %v600
    %v613 = vadd.f32 %v590, %v604
    %v614 = vxor.u32 %v608, 2147483648
    %v615 = vxor.u32 %v611, 2147483648
    %v616 = vmul.f32 %v614, 1.442695
    %v617 = vpow.pop %v616
    %v618 = vmul.f32 %v615, 1.442695
    %v619 = vpow.pop %v618
    %v620 = vadd.f32 %v617, 1.0
    %v621 = vadd.f32 %v619, 1.0
    %v622 = vrcp.pop %v620
    %v623 = vmul.f32 1.0, %v622
    %v624 = vrcp.pop %v621
    %v625 = vmul.f32 1.0, %v624
    %v626 = vxor.u32 %v609, 2147483648
    %v627 = vxor.u32 %v612, 2147483648
    %v628 = vmul.f32 %v626, 1.442695
    %v629 = vpow.pop %v628
    %v630 = vmul.f32 %v627, 1.442695
    %v631 = vpow.pop %v630
    %v632 = vadd.f32 %v629, 1.0
    %v633 = vadd.f32 %v631, 1.0
    %v634 = vrcp.pop %v632
    %v635 = vmul.f32 1.0, %v634
    %v636 = vrcp.pop %v633
    %v637 = vmul.f32 1.0, %v636
    %v638 = vld [vmem:[%s8] sm:$0x1]
    %v640 = vlaneseq
    %v641 = vshrl.u32 %v640, 7
    %v642 = vsub.s32 0, %v641
    %v643 = vrot.slane %v638, %v642
    %v645 = vmul.f32 %v623, %v643
    %v646 = vmul.f32 %v625, %v643
    %v647 = vadd.f32 %v610, %v645
    %v648 = vadd.f32 %v613, %v646
    %v649 = vtanh.pop %v647
    %v650 = vtanh.pop %v648
    %v651 = vsub.f32 1.0, %v635
    %v652 = vsub.f32 1.0, %v637
    %v653 = vmul.f32 %v651, %v649
    %v654 = vmul.f32 %v652, %v650
    %v655 = vpack.c.bf16 %v654, %v653
    %v656 = vld [vmem:[%s9] sm:$0xf]
    %v657 = vld [vmem:[%s9 + $0x4] sm:$0xf]
    %v658 = vld [vmem:[%s9 + $0x8] sm:$0xf]
    %v659 = vld [vmem:[%s9 + $0xc] sm:$0xf]
    %v660 = vld [vmem:[%s9 + $0x10] sm:$0xf]
    %v661 = vld [vmem:[%s9 + $0x14] sm:$0xf]
    %v662 = vld [vmem:[%s9 + $0x18] sm:$0xf]
    %v663 = vld [vmem:[%s9 + $0x1c] sm:$0xf]
    %v664 = vld [vmem:[%s9 + $0x20] sm:$0xf]
    %v665 = vld [vmem:[%s9 + $0x24] sm:$0xf]
    %v666 = vld [vmem:[%s9 + $0x28] sm:$0xf]
    %v667 = vld [vmem:[%s9 + $0x2c] sm:$0xf]
    %v668 = vld [vmem:[%s9 + $0x30] sm:$0xf]
    %v669 = vld [vmem:[%s9 + $0x34] sm:$0xf]
    %v670 = vld [vmem:[%s9 + $0x38] sm:$0xf]
    %v671 = vld [vmem:[%s9 + $0x3c] sm:$0xf]
    %v672 = vld [vmem:[%s10] sm:$0x1]
    %v674 = vlaneseq
    %v675 = vshrl.u32 %v674, 7
    %v676 = vsub.s32 0, %v675
    %v677 = vrot.slane %v672, %v676
    %v695 = vunpack.c.l.b16 %v656
    %v696 = vunpack.c.l.b16 %v657
    %v697 = vunpack.c.l.b16 %v658
    %v698 = vunpack.c.l.b16 %v659
    %v699 = vunpack.c.l.b16 %v660
    %v700 = vunpack.c.l.b16 %v661
    %v701 = vunpack.c.l.b16 %v662
    %v702 = vunpack.c.l.b16 %v663
    %v703 = vunpack.c.l.b16 %v664
    %v704 = vunpack.c.l.b16 %v665
    %v705 = vunpack.c.l.b16 %v666
    %v706 = vunpack.c.l.b16 %v667
    %v707 = vunpack.c.l.b16 %v668
    %v708 = vunpack.c.l.b16 %v669
    %v709 = vunpack.c.l.b16 %v670
    %v710 = vunpack.c.l.b16 %v671
    %v711 = vpack.c.b16 %v696, %v695
    %v712 = vpack.c.b16 %v698, %v697
    %v713 = vpack.c.b16 %v700, %v699
    %v714 = vpack.c.b16 %v702, %v701
    %v715 = vpack.c.b16 %v704, %v703
    %v716 = vpack.c.b16 %v706, %v705
    %v717 = vpack.c.b16 %v708, %v707
    %v718 = vpack.c.b16 %v710, %v709
    %727 = vmatprep.subr.bf16.mxu0 0
    %728 = vmatpush1.bf16.msra.mxu0 %v718
    %729 = vmatprep.subr.bf16.mxu0 0
    %730 = vmatpush1.bf16.msra.mxu0 %v717
    %731 = vmatprep.subr.bf16.mxu0 0
    %732 = vmatpush1.bf16.msra.mxu0 %v716
    %733 = vmatprep.subr.bf16.mxu0 0
    %734 = vmatpush1.bf16.msra.mxu0 %v715
    %735 = vmatprep.subr.bf16.mxu0 0
    %736 = vmatpush1.bf16.msra.mxu0 %v714
    %737 = vmatprep.subr.bf16.mxu0 0
    %738 = vmatpush1.bf16.msra.mxu0 %v713
    %739 = vmatprep.subr.bf16.mxu0 0
    %740 = vmatpush1.bf16.msra.mxu0 %v712
    %741 = vmatprep.subr.bf16.mxu0 0
    %742 = vmatpush1.bf16.msra.mxu0 %v711
    %743 = vmatprep.subr.bf16.mxu0 0
    %744 = vmatpush2.bf16.msra.mxu0 0
    %745 = vmatprep.subr.bf16.mxu0 0
    %746 = vmatpush2.bf16.msra.mxu0 0
    %747 = vmatprep.subr.bf16.mxu0 0
    %748 = vmatpush2.bf16.msra.mxu0 0
    %749 = vmatprep.subr.bf16.mxu0 0
    %750 = vmatpush2.bf16.msra.mxu0 0
    %751 = vmatprep.subr.bf16.mxu0 0
    %752 = vmatpush2.bf16.msra.mxu0 0
    %753 = vmatprep.subr.bf16.mxu0 0
    %754 = vmatpush2.bf16.msra.mxu0 0
    %755 = vmatprep.subr.bf16.mxu0 0
    %756 = vmatpush2.bf16.msra.mxu0 0
    %757 = vmatprep.subr.bf16.mxu0 0
    %758 = vmatpush2.bf16.msra.mxu0 0
    %759 = vmatprep.mubr.bf16.mxu0 0
    %760 = vmatmul.mubr.bf16.gmra.mxu0 %v655
    %v761 = vpop.f32.mrf.mxu0
    %v762 = vadd.f32 %v677, %v761
    %v763 = vpop.f32.mrf.mxu0
    %v764 = vpop.f32.mrf.mxu0
    %v765 = vadd.f32 %v677, %v764
    %v766 = vpop.f32.mrf.mxu0
    %767 = vdwg.mxu0
    %s768 = sld [smem:[#allocation2]]
    %v769 = vstv %s768
    %v770 = vmul.f32 %v762, %v769
    %v771 = vmul.f32 %v765, %v769
    %v772 = vsel %vm485, %v770, -inf
    %773 = vmax.xlane.f32.xlu0 %v772
    %v774 = vpop.xlane.xlu0 %773
    %v775 = vsel %vm485, %v771, -inf
    %776 = vmax.xlane.f32.xlu0 %v775
    %v777 = vpop.xlane.xlu0 %776
    %v778 = vsub.f32 %v770, %v774
    %v779 = vsub.f32 %v771, %v777
    %v780 = vmul.f32 %v778, 1.442695
    %v781 = vpow.pop %v780
    %v782 = vmul.f32 %v779, 1.442695
    %v783 = vpow.pop %v782
    %v784 = vsel %vm485, %v781, 0.0
    %785 = vadd.xlane.f32.xlu0 %v784
    %v786 = vpop.xlane.xlu0 %785
    %v787 = vsel %vm485, %v783, 0.0
    %788 = vadd.xlane.f32.xlu0 %v787
    %v789 = vpop.xlane.xlu0 %788
    %v790 = vrcp.pop %v786
    %v791 = vrcp.pop %v789
    %vm792 = vcmask 97312
    %v793 = vsel %vm792, %v770, -inf
    %794 = vmax.xlane.f32.xlu0 %v793
    %v795 = vpop.xlane.xlu0 %794
    %v796 = vsel %vm792, %v771, -inf
    %797 = vmax.xlane.f32.xlu0 %v796
    %v798 = vpop.xlane.xlu0 %797
    %v799 = vsub.f32 %v770, %v795
    %v800 = vsub.f32 %v771, %v798
    %v801 = vmul.f32 %v799, 1.442695
    %v802 = vpow.pop %v801
    %v803 = vmul.f32 %v800, 1.442695
    %v804 = vpow.pop %v803
    %807 = vrot.lane.b32.xlu0 %v802, 124
    %v808 = vpop.permute.xlu0 %807
    %809 = vrot.lane.b32.xlu0 %v804, 124
    %v810 = vpop.permute.xlu0 %809
    %v813 = vsel %vm304, %v808, 0.0
    %814 = vadd.xlane.f32.xlu0 %v813
    %v815 = vpop.xlane.xlu0 %814
    %v816 = vsel %vm304, %v810, 0.0
    %817 = vadd.xlane.f32.xlu0 %v816
    %v818 = vpop.xlane.xlu0 %817
    %v819 = vrcp.pop %v815
    %v820 = vrcp.pop %v818
    %v821 = vadd.f32 %v790, %v819
    %v822 = vadd.f32 %v791, %v820
    %vm823 = vcmask 113760
    %v824 = vsel %vm823, %v770, -inf
    %825 = vmax.xlane.f32.xlu0 %v824
    %v826 = vpop.xlane.xlu0 %825
    %v827 = vsel %vm823, %v771, -inf
    %828 = vmax.xlane.f32.xlu0 %v827
    %v829 = vpop.xlane.xlu0 %828
    %v830 = vsub.f32 %v770, %v826
    %v831 = vsub.f32 %v771, %v829
    %v832 = vmul.f32 %v830, 1.442695
    %v833 = vpow.pop %v832
    %v834 = vmul.f32 %v831, 1.442695
    %v835 = vpow.pop %v834
    %838 = vrot.lane.b32.xlu0 %v833, 116
    %v839 = vpop.permute.xlu0 %838
    %840 = vrot.lane.b32.xlu0 %v835, 116
    %v841 = vpop.permute.xlu0 %840
    %v844 = vsel %vm141, %v839, 0.0
    %845 = vadd.xlane.f32.xlu0 %v844
    %v846 = vpop.xlane.xlu0 %845
    %v847 = vsel %vm141, %v841, 0.0
    %848 = vadd.xlane.f32.xlu0 %v847
    %v849 = vpop.xlane.xlu0 %848
    %v850 = vrcp.pop %v846
    %v851 = vrcp.pop %v849
    %v852 = vadd.f32 %v821, %v850
    %v853 = vadd.f32 %v822, %v851
    %v854 = vmul.f32 %v852, 0.33333334
    %v855 = vmul.f32 %v853, 0.33333334
    %v856 = vlaneseq
    %v857 = vand.u32 %v856, 127
    %vm858 = vcmp.eq.s32.totalorder %v857, 15
    %v859 = vsel %vm858, %v854, %v762
    %v860 = vsel %vm858, %v855, %v765
    %vm861 = vcmask 130048
    %862 = vst.msk [vmem:[#allocation3] sm:$0xff] %vm861, %v859
    %863 = vst.msk [vmem:[#allocation3 + $0x8] sm:$0xff] %vm861, %v860
    // Predicated region
    $region46: #{tpu_custom_call.1} parent=1 // pred_check
      _
    $region47: #{tpu_custom_call.1} parent=1 // pred_check_branch
      %865 = sbr.rel (0) target = $region49
    $region48: #{tpu_custom_call.1} parent=1 // pred_region
      %s867 = ssub.s32 256, 32
      %868 = vsyncadd [#allocation4], %s867
      %s869 = sshll.u32 [#allocation3], 4
      %s870 = int_to_ptr.vmem [resolvable:$true] %s869
      %875 = dma.vmem_to_hbm [thread:$0]  %s870, 32, %s11, [#allocation4], 32, 32, 2
    $region49: #{tpu_custom_call.1} parent=1 // pred_fallthru
      _
    // Predicated region
    $region50: #{tpu_custom_call.1} parent=1 // pred_check
      _
    $region51: #{tpu_custom_call.1} parent=1 // pred_check_branch
      %877 = sbr.rel (0) target = $region53
    $region52: #{tpu_custom_call.1} parent=1 // pred_region
      %878 = dma.done [#allocation4], 256
    $region53: #{tpu_custom_call.1} parent=1 // pred_fallthru
      _
    %879 = vsyncpa [#allocation4], 1

</llo_original>
